<compile_context>
chip_gen: v6e
topology: v6e:2x2x1
jax: 0.10.0
libtpu: 0.0.40
codegen_flags: <defaults>
</compile_context>

<pallas_src>
import jax
import jax.numpy as jnp
from jax.experimental import pallas as pl
from jax.experimental.pallas import tpu as pltpu


def _sc_att_kernel(b_ref, x_ref, o_ref):
    # b_ref : VMEM (1, CS, CS)   fused per-batch matrix  gamma*attn@kron(W,I_S) + I
    # x_ref : VMEM (1, CS, THW)  lane panel of the flattened input
    # o_ref : VMEM (1, CS, THW)
    o_ref[0] = jnp.dot(
        b_ref[0], x_ref[0], preferred_element_type=jnp.float32
    ).astype(o_ref.dtype)


def _round_up(v, m):
    return ((v + m - 1) // m) * m


def sc_att_forward(x, attention, w_value, gamma, *, use_bf16=False):
    """x: (N, C, S, H, W), attention: (N, C*S, C*S),
    w_value: (C, C) (1x1x1 conv weight, bias=False), gamma: scalar."""
    N, C, S, H, W = x.shape
    CS, HW = C * S, H * W

    # ---- Fold the 1x1 conv, gamma AND the residual into one per-batch matrix ----
    #   out = gamma * attn @ kron(W, I_S) @ x + x == (gamma*attn@kron(W,I_S) + I) @ x
    # Column index b of attention decomposes as b = o*S + s (channel-major,
    # scale-minor), exactly torch's .view(n, c*s, -1) on contiguous NCSHW.
    attn_r = attention.reshape(N, CS, C, S)                               # (n, a, o, s)
    b_fused = jnp.einsum("naos,oi->nais", attn_r, w_value).reshape(N, CS, CS)
    b_fused = jnp.asarray(gamma, jnp.float32) * b_fused + jnp.eye(CS, dtype=jnp.float32)

    x_flat = x.reshape(N, CS, HW)                                         # matches torch .view

    if use_bf16:
        b_fused = b_fused.astype(jnp.bfloat16)
        x_flat = x_flat.astype(jnp.bfloat16)

    # ---- Lane-panel width over HW (no HBM padding; Pallas masks the ragged edge) ----
    if HW <= 1024:
        thw = HW                       # full extent: always a legal block shape
    else:
        thw = 1024 if N >= 2 else 512  # keep >=2 grid steps for the v7x megacore
    n_panels = -(-HW // thw)
    grid = (N, n_panels)

    # ---- VMEM budget: B (double-buffered) + x/out panels (double-buffered) ----
    itemsize = 2 if use_bf16 else 4
    cs_pad = _round_up(CS, 8)
    thw_pad = _round_up(thw, 128)
    est_bytes = itemsize * 2 * cs_pad * cs_pad + (itemsize + 4) * 2 * cs_pad * thw_pad
    vmem_limit = int(min(max(2 * est_bytes, 24 * 1024 * 1024), 48 * 1024 * 1024))

    cost = pl.CostEstimate(
        flops=2 * N * CS * CS * HW,
        transcendentals=0,
        bytes_accessed=itemsize * N * CS * (HW + CS) + 4 * N * CS * HW,
    )

    out = pl.pallas_call(
        _sc_att_kernel,
        out_shape=jax.ShapeDtypeStruct((N, CS, HW), x.dtype),
        grid_spec=pltpu.PrefetchScalarGridSpec(
            num_scalar_prefetch=0,
            grid=grid,
            in_specs=[
                # fused per-batch matrix: constant along the panel axis -> VMEM-resident
                pl.BlockSpec((1, CS, CS), lambda n, j: (n, 0, 0)),
                # streamed lane panel of x
                pl.BlockSpec((1, CS, thw), lambda n, j: (n, 0, j)),
            ],
            out_specs=pl.BlockSpec((1, CS, thw), lambda n, j: (n, 0, j)),
        ),
        compiler_params=pltpu.CompilerParams(
            dimension_semantics=("parallel", "parallel"),
            vmem_limit_bytes=vmem_limit,
        ),
        cost_estimate=cost,
    )(b_fused, x_flat)

    return out.reshape(N, C, S, H, W)


def sc_att_reference(x, attention, w_value, gamma):
    """Plain-JAX reference mirroring the PyTorch forward."""
    N, C, S, H, W = x.shape
    proj = jnp.einsum("oi,nishw->noshw", w_value, x)                 # 1x1x1 conv, no bias
    proj_flat = proj.reshape(N, C * S, H * W)
    out = jnp.einsum("nab,nbk->nak", attention, proj_flat)           # bmm
    out = out.reshape(N, C, S, H, W)
    return gamma * out + x


if __name__ == "__main__":
    key = jax.random.PRNGKey(0)
    k_x, k_att, k_w = jax.random.split(key, 3)

    # Small shapes consistent with the module: batch=2, channels=4, scales=3, spatial=8
    N, C, S, H, W = 2, 4, 3, 8, 8
    CS = C * S

    x = jax.random.normal(k_x, (N, C, S, H, W), dtype=jnp.float32)
    attention = jax.nn.softmax(
        jax.random.normal(k_att, (N, CS, CS), dtype=jnp.float32), axis=-1
    )
    # value_conv weight: SESConv_H_H_1x1(inp, inp) -> Conv3d(C, C, kernel=1, bias=False)
    w_value = jax.random.normal(k_w, (C, C), dtype=jnp.float32) * 0.1
    # Module __init__ sets gamma = zeros(1); use a deterministic nonzero value so the
    # attention/conv path actually contributes to the output.
    gamma = 0.5

    out = sc_att_forward(x, attention, w_value, gamma)
    out = jax.block_until_ready(out)

    ref = sc_att_reference(x, attention, w_value, gamma)
    assert out.shape == (N, C, S, H, W)
    assert jnp.allclose(out, ref, atol=1e-5, rtol=1e-5), "mismatch vs reference"

    print("KERNEL_OK")
</pallas_src>

<mosaic_0001>
module attributes {stable_mosaic.version = 11 : i64} {
  func.func @_sc_att_kernel(%arg0: i32, %arg1: i32, %arg2: memref<1x12x12xf32, #tpu.memory_space<vmem>>, %arg3: memref<1x12x64xf32, #tpu.memory_space<vmem>>, %arg4: memref<1x12x64xf32, #tpu.memory_space<vmem>>) attributes {dimension_semantics = [#tpu.dimension_semantics<parallel>, #tpu.dimension_semantics<parallel>], iteration_bounds = array<i64: 2, 1>, scalar_prefetch = 0 : i64, scratch_operands = 0 : i64, tpu.core_type = #tpu.core_type<tc>, window_params = [{transform_indices = @transform_0, window_bounds = array<i64: 1, 12, 12>}, {transform_indices = @transform_1, window_bounds = array<i64: 1, 12, 64>}, {transform_indices = @transform_2, window_bounds = array<i64: 1, 12, 64>}]} {
    %c0 = arith.constant 0 : index
    %c0_0 = arith.constant 0 : index
    %c0_1 = arith.constant 0 : index
    %0 = vector.load %arg2[%c0, %c0_0, %c0_1] : memref<1x12x12xf32, #tpu.memory_space<vmem>>, vector<1x12x12xf32>
    %1 = vector.shape_cast %0 : vector<1x12x12xf32> to vector<12x12xf32>
    %c0_2 = arith.constant 0 : index
    %c0_3 = arith.constant 0 : index
    %c0_4 = arith.constant 0 : index
    %2 = vector.load %arg3[%c0_2, %c0_3, %c0_4] : memref<1x12x64xf32, #tpu.memory_space<vmem>>, vector<1x12x64xf32>
    %3 = vector.shape_cast %2 : vector<1x12x64xf32> to vector<12x64xf32>
    %cst = arith.constant dense<0.000000e+00> : vector<12x64xf32>
    %4 = tpu.matmul %1, %3, %cst {dimension_numbers = #tpu.dot_dimension_numbers<[1], [0], [0], [1], [0, 0, 1, 1], [], []>} : vector<12x12xf32>, vector<12x64xf32>, vector<12x64xf32> -> vector<12x64xf32>
    %c0_5 = arith.constant 0 : index
    %c0_6 = arith.constant 0 : index
    %c0_7 = arith.constant 0 : index
    %5 = vector.load %arg4[%c0_5, %c0_6, %c0_7] : memref<1x12x64xf32, #tpu.memory_space<vmem>>, vector<1x12x64xf32>
    %6 = vector.shape_cast %5 : vector<1x12x64xf32> to vector<12x64xf32>
    %7 = vector.shape_cast %4 : vector<12x64xf32> to vector<1x12x64xf32>
    tpu.vector_store %arg4[%c0_5, %c0_6, %c0_7], %7 {strides = array<i32>} : memref<1x12x64xf32, #tpu.memory_space<vmem>>, vector<1x12x64xf32>,
    return
  }
  func.func @transform_0(%arg0: i32, %arg1: i32) -> (i32, i32, i32) {
    %c0_i32 = arith.constant 0 : i32
    %c0_i32_0 = arith.constant 0 : i32
    %c0_i32_1 = arith.constant 0 : i32
    return %arg0, %c0_i32, %c0_i32_0 : i32, i32, i32
  }
  func.func @transform_1(%arg0: i32, %arg1: i32) -> (i32, i32, i32) {
    %c0_i32 = arith.constant 0 : i32
    %c0_i32_0 = arith.constant 0 : i32
    return %arg0, %c0_i32, %arg1 : i32, i32, i32
  }
  func.func @transform_2(%arg0: i32, %arg1: i32) -> (i32, i32, i32) {
    %c0_i32 = arith.constant 0 : i32
    %c0_i32_0 = arith.constant 0 : i32
    return %arg0, %c0_i32, %arg1 : i32, i32, i32
  }
}

</mosaic_0001>

<llo_original>
// kernel: tpu_custom_call.1
$region0: #{tpu_custom_call.1}
  #allocation0 [shape = 'u32[]', space=smem, size = 0x4, offset = 0x4, fixed_abs, tag = 'smem constant byte address 0x4 - core index']
  #allocation1 [shape = 'u32[144,128]{1,0:T(1,128)}', space=vmem, size = 0x12000, scoped, tag = 'internal scratch']
  %s0 = inlined_call_operand.vmem [shape: f32[2,12,12], index: 0, kind: input, shape index: {}]
  %s1 = inlined_call_operand.vmem [shape: f32[2,12,64], index: 1, kind: input, shape index: {}]
  %s2 = inlined_call_operand.vmem [shape: f32[2,12,64], index: 2, kind: output, shape index: {}]
  %s3 = sld [smem:[#allocation0]]
  $region41: #{tpu_custom_call.1} parent=0
    _
  %s5 = ssub.s32 1, %s3
  %s6 = scalar_select 0, %s5, %s3
  loop: start=0, step=1, limit=4
  $region2: #{tpu_custom_call.1} parent=0 // loop_pre_header
    _
  $region3: #{tpu_custom_call.1} parent=0 // loop_header
    %s8 = sphi 0, %s12
    %p9 = scmp.ge.s32.totalorder %s8, 4
    %s15 = sphi 0, %s27
    %s16 = sphi 0, %s23
    %s17 = sphi 0, %s15
    %s18 = sphi 0, %s16
    %s19 = sphi 0, %s17
    %s20 = sphi 0, %s18
    %s30 = sphi 0, %s32
    %s33 = sphi 0, %s30
    %s34 = sphi 0, %s33
    %s50 = sphi 0, %s34
    %s58 = sphi 0, %s60
    %s61 = sphi 0, %s58
    %s62 = sphi 0, %s61
    %s78 = sphi 0, %s62
    %s86 = sphi 0, %s88
    %s89 = sphi 0, %s86
    %s90 = sphi 0, %s89
    %s106 = sphi 0, %s90
  $region4: #{tpu_custom_call.1} parent=0 // loop_header_branch
    %11 = sbr.rel (%p9) target = $region8
  $region5: #{tpu_custom_call.1} parent=0 // loop_body
    %s13 = ssub.s32 %s8, 1
    %s14 = ssub.s32 %s8, 2
    %s21 = sadd.s32 1, %s16
    %p22 = scmp.ge.s32.totalorder %s21, 1
    %s23 = scalar_select %p22, 0, %s21
    %s24 = sadd.s32 1, %s15
    %s25 = scalar_select %p22, %s24, %s15
    %p26 = scmp.ge.s32.totalorder %s25, 2
    %s27 = scalar_select %p26, 0, %s25
    %s28 = ssub.s32 %s15, %s27
    %p29 = scmp.eq.s32.totalorder %s28, 0
    %s31 = sadd.s32 %s30, 1
    %s32 = scalar_select %p29, %s30, %s31
    %p35 = pneg %p29
    %p36 = scmp.eq.s32.totalorder %s8, 1
    %p37 = por %p35, %p36
    %p38 = scmp.ne.s32.totalorder %s30, %s33
    %p39 = scmp.eq.s32.totalorder %s8, 0
    %p40 = por %p38, %p39
    %p41 = scmp.ne.s32.totalorder %s30, %s33
    %p42 = scmp.eq.s32.totalorder %s13, 1
    %p43 = por %p41, %p42
    %p44 = scmp.ne.s32.totalorder %s33, %s34
    %p45 = scmp.eq.s32.totalorder %s13, 0
    %p46 = por %p44, %p45
    %p47 = scmp.ne.s32.totalorder %s33, %s34
    %p48 = scmp.eq.s32.totalorder %s14, 1
    %p49 = por %p47, %p48
    %p51 = scmp.ne.s32.totalorder %s34, %s50
    %p52 = scmp.eq.s32.totalorder %s14, 0
    %p53 = por %p51, %p52
    %s54 = ssub.s32 %s15, %s27
    %s55 = ssub.s32 %s16, %s23
    %s56 = sor.u32 %s54, %s55
    %p57 = scmp.eq.s32.totalorder %s56, 0
    %s59 = sadd.s32 %s58, 1
    %s60 = scalar_select %p57, %s58, %s59
    %p63 = pneg %p57
    %p64 = scmp.eq.s32.totalorder %s8, 1
    %p65 = por %p63, %p64
    %p66 = scmp.ne.s32.totalorder %s58, %s61
    %p67 = scmp.eq.s32.totalorder %s8, 0
    %p68 = por %p66, %p67
    %p69 = scmp.ne.s32.totalorder %s58, %s61
    %p70 = scmp.eq.s32.totalorder %s13, 1
    %p71 = por %p69, %p70
    %p72 = scmp.ne.s32.totalorder %s61, %s62
    %p73 = scmp.eq.s32.totalorder %s13, 0
    %p74 = por %p72, %p73
    %p75 = scmp.ne.s32.totalorder %s61, %s62
    %p76 = scmp.eq.s32.totalorder %s14, 1
    %p77 = por %p75, %p76
    %p79 = scmp.ne.s32.totalorder %s62, %s78
    %p80 = scmp.eq.s32.totalorder %s14, 0
    %p81 = por %p79, %p80
    %s82 = ssub.s32 %s15, %s27
    %s83 = ssub.s32 %s16, %s23
    %s84 = sor.u32 %s82, %s83
    %p85 = scmp.eq.s32.totalorder %s84, 0
    %s87 = sadd.s32 %s86, 1
    %s88 = scalar_select %p85, %s86, %s87
    %p91 = pneg %p85
    %p92 = scmp.eq.s32.totalorder %s8, 1
    %p93 = por %p91, %p92
    %p94 = scmp.ne.s32.totalorder %s86, %s89
    %p95 = scmp.eq.s32.totalorder %s8, 0
    %p96 = por %p94, %p95
    %p97 = scmp.ne.s32.totalorder %s86, %s89
    %p98 = scmp.eq.s32.totalorder %s13, 1
    %p99 = por %p97, %p98
    %p100 = scmp.ne.s32.totalorder %s89, %s90
    %p101 = scmp.eq.s32.totalorder %s13, 0
    %p102 = por %p100, %p101
    %p103 = scmp.ne.s32.totalorder %s89, %s90
    %p104 = scmp.eq.s32.totalorder %s14, 1
    %p105 = por %p103, %p104
    %p107 = scmp.ne.s32.totalorder %s90, %s106
    %p108 = scmp.eq.s32.totalorder %s14, 0
    %p109 = por %p107, %p108
    %p110 = scmp.le.s32.totalorder 1, %s8
    %p111 = scmp.lt.s32.totalorder %s8, 3
    %p112 = pnand %p110, %p111
    %p113 = pneg %p112
    // Predicated region
    $region9: #{tpu_custom_call.1} parent=5 // pred_check
      _
    $region10: #{tpu_custom_call.1} parent=5 // pred_check_branch
      %115 = sbr.rel (%p112) target = $region12
    $region11: #{tpu_custom_call.1} parent=5 // pred_region
      %s116 = ssub.s32 %s8, 1
    $region12: #{tpu_custom_call.1} parent=5 // pred_fallthru
      _
    %p117 = scmp.lt.s32.totalorder %s8, 2
    // Predicated region
    $region13: #{tpu_custom_call.1} parent=5 // pred_check
      %p118 = pneg %p117
    $region14: #{tpu_custom_call.1} parent=5 // pred_check_branch
      %120 = sbr.rel (%p118) target = $region16
    $region15: #{tpu_custom_call.1} parent=5 // pred_region
      // Predicated region
      $region17: #{tpu_custom_call.1} parent=15 // pred_check
        %p121 = pneg %p40
      $region18: #{tpu_custom_call.1} parent=15 // pred_check_branch
        %123 = sbr.rel (%p121) target = $region20
      $region19: #{tpu_custom_call.1} parent=15 // pred_region
        %p124 = scmp.lt.s32.totalorder %s15, 1
        %s125 = scalar_select %p124, %s15, 1
        %s126 = smul.addr %s125, 2
        %s127 = smul.addr %s126, 8
        %s128 = scalar_lea.vmem %s0, %s127
      $region20: #{tpu_custom_call.1} parent=15 // pred_fallthru
        _
      // Predicated region
      $region21: #{tpu_custom_call.1} parent=15 // pred_check
        %p129 = pneg %p68
      $region22: #{tpu_custom_call.1} parent=15 // pred_check_branch
        %131 = sbr.rel (%p129) target = $region24
      $region23: #{tpu_custom_call.1} parent=15 // pred_region
        %p132 = scmp.lt.s32.totalorder %s15, 1
        %s133 = scalar_select %p132, %s15, 1
        %p134 = scmp.lt.s32.totalorder %s16, 0
        %s135 = scalar_select %p134, %s16, 0
        %s136 = smul.addr %s133, 2
        %s137 = sadd.s32 %s135, %s136
        %s138 = smul.addr %s137, 8
        %s139 = scalar_lea.vmem %s1, %s138
      $region24: #{tpu_custom_call.1} parent=15 // pred_fallthru
        _
    $region16: #{tpu_custom_call.1} parent=5 // pred_fallthru
      _
    %p140 = scmp.le.s32.totalorder 1, %s8
    %p141 = scmp.lt.s32.totalorder %s8, 3
    %p142 = pnand %p140, %p141
    %p143 = pneg %p142
    // Predicated region
    $region25: #{tpu_custom_call.1} parent=5 // pred_check
      _
    $region26: #{tpu_custom_call.1} parent=5 // pred_check_branch
      %145 = sbr.rel (%p142) target = $region28
    $region27: #{tpu_custom_call.1} parent=5 // pred_region
      %s146 = ssub.s32 %s8, 1
      %p147 = scmp.lt.s32.totalorder %s17, 1
      %s148 = scalar_select %p147, %s17, 1
      %s149 = smul.addr %s148, 2
      %s150 = smul.addr %s149, 8
      %s151 = scalar_lea.vmem %s0, %s150
      %p152 = pneg %p46
      %p153 = pneg %p43
      %p154 = scmp.lt.s32.totalorder %s17, 1
      %s155 = scalar_select %p154, %s17, 1
      %p156 = scmp.lt.s32.totalorder %s18, 0
      %s157 = scalar_select %p156, %s18, 0
      %s158 = smul.addr %s155, 2
      %s159 = sadd.s32 %s157, %s158
      %s160 = smul.addr %s159, 8
      %s161 = scalar_lea.vmem %s1, %s160
      %p162 = pneg %p74
      %p163 = pneg %p71
      %p164 = pneg %p102
      %p165 = pneg %p99
      %p166 = scmp.lt.s32.totalorder %s17, 1
      %s167 = scalar_select %p166, %s17, 1
      %p168 = scmp.lt.s32.totalorder %s18, 0
      %s169 = scalar_select %p168, %s18, 0
      %s170 = smul.addr %s167, 2
      %s171 = sadd.s32 %s169, %s170
      %s172 = smul.addr %s171, 8
      %s173 = scalar_lea.vmem %s2, %s172
      %p174 = scmp.lt.s32.totalorder %s17, 1
      %s175 = scalar_select %p174, %s17, 1
      %s176 = smul.addr %s175, 2
      %s177 = smul.addr %s176, 8
      %s178 = scalar_lea.vmem %s0, %s177
      %p179 = scmp.lt.s32.totalorder %s17, 1
      %s180 = scalar_select %p179, %s17, 1
      %p181 = scmp.lt.s32.totalorder %s18, 0
      %s182 = scalar_select %p181, %s18, 0
      %s183 = smul.addr %s180, 2
      %s184 = sadd.s32 %s182, %s183
      %s185 = smul.addr %s184, 8
      %s186 = scalar_lea.vmem %s1, %s185
      %p187 = scmp.lt.s32.totalorder %s17, 1
      %s188 = scalar_select %p187, %s17, 1
      %p189 = scmp.lt.s32.totalorder %s18, 0
      %s190 = scalar_select %p189, %s18, 0
      %s191 = smul.addr %s188, 2
      %s192 = sadd.s32 %s190, %s191
      %s193 = smul.addr %s192, 8
      %s194 = scalar_lea.vmem %s2, %s193
      %v195 = vld [vmem:[%s178] sm:$0xff]
      %v196 = vld [vmem:[%s178 + $0x8] sm:$0xf]
      %v197 = vld [vmem:[%s186] sm:$0xff]
      %v198 = vld [vmem:[%s186 + $0x8] sm:$0xf]
      %vm199 = vcmask 97280
      %v201 = vsel %vm199, %v195, 0
      %v204 = vsel %vm199, %v196, 0
      %vm206 = vcmask 1043456
      %v208 = vsel %vm206, %v198, 0
      %210 = vmatprep.subr.mxu0 0.0
      %211 = vmatpush1.msra.mxu0 0.0
      %212 = vmatprep.subr.mxu0 0.0
      %213 = vmatpush1.msra.mxu0 0.0
      %214 = vmatprep.subr.mxu0 0.0
      %215 = vmatpush1.msra.mxu0 0.0
      %216 = vmatprep.subr.mxu0 0.0
      %217 = vmatpush1.msra.mxu0 0.0
      %218 = vmatprep.subr.mxu0 0.0
      %219 = vmatpush1.msra.mxu0 0.0
      %220 = vmatprep.subr.mxu0 0.0
      %221 = vmatpush1.msra.mxu0 0.0
      %222 = vmatprep.subr.mxu0 0.0
      %223 = vmatpush1.msra.mxu0 0.0
      %224 = vmatprep.subr.mxu0 0.0
      %225 = vmatpush1.msra.mxu0 0.0
      %226 = vmatprep.subr.mxu0 0.0
      %227 = vmatpush1.msra.mxu0 0.0
      %228 = vmatprep.subr.mxu0 0.0
      %229 = vmatpush1.msra.mxu0 0.0
      %230 = vmatprep.subr.mxu0 0.0
      %231 = vmatpush1.msra.mxu0 0.0
      %232 = vmatprep.subr.mxu0 0.0
      %233 = vmatpush1.msra.mxu0 0.0
      %234 = vmatprep.subr.mxu0 0.0
      %235 = vmatpush1.msra.mxu0 0.0
      %236 = vmatprep.subr.mxu0 0.0
      %237 = vmatpush1.msra.mxu0 0.0
      %238 = vmatprep.subr.mxu0 0.0
      %239 = vmatpush1.msra.mxu0 %v208
      %240 = vmatprep.subr.mxu0 0.0
      %241 = vmatpush1.msra.mxu0 %v197
      %242 = vmatprep.subr.mxu0 0.0
      %243 = vmatpush2.msra.mxu0 0.0
      %244 = vmatprep.subr.mxu0 0.0
      %245 = vmatpush2.msra.mxu0 0.0
      %246 = vmatprep.subr.mxu0 0.0
      %247 = vmatpush2.msra.mxu0 0.0
      %248 = vmatprep.subr.mxu0 0.0
      %249 = vmatpush2.msra.mxu0 0.0
      %250 = vmatprep.subr.mxu0 0.0
      %251 = vmatpush2.msra.mxu0 0.0
      %252 = vmatprep.subr.mxu0 0.0
      %253 = vmatpush2.msra.mxu0 0.0
      %254 = vmatprep.subr.mxu0 0.0
      %255 = vmatpush2.msra.mxu0 0.0
      %256 = vmatprep.subr.mxu0 0.0
      %257 = vmatpush2.msra.mxu0 0.0
      %258 = vmatprep.subr.mxu0 0.0
      %259 = vmatpush2.msra.mxu0 0.0
      %260 = vmatprep.subr.mxu0 0.0
      %261 = vmatpush2.msra.mxu0 0.0
      %262 = vmatprep.subr.mxu0 0.0
      %263 = vmatpush2.msra.mxu0 0.0
      %264 = vmatprep.subr.mxu0 0.0
      %265 = vmatpush2.msra.mxu0 0.0
      %266 = vmatprep.subr.mxu0 0.0
      %267 = vmatpush2.msra.mxu0 0.0
      %268 = vmatprep.subr.mxu0 0.0
      %269 = vmatpush2.msra.mxu0 0.0
      %270 = vmatprep.subr.mxu0 0.0
      %271 = vmatpush2.msra.mxu0 0.0
      %272 = vmatprep.subr.mxu0 0.0
      %273 = vmatpush2.msra.mxu0 0.0
      %274 = vmatprep.mubr.f32.mxu0 0.0
      %275 = vmatmul.mubr.f32.gmra.mxu0 %v201
      %v276 = vpop.f32.mrf.mxu0
      %v277 = vadd.f32 0.0, %v276
      %v278 = vpop.f32.mrf.mxu0
      %279 = vmatprep.mubr.f32.mxu0 0.0
      %280 = vmatmul.mubr.f32.gmra.mxu0 %v204
      %v281 = vpop.f32.mrf.mxu0
      %v282 = vadd.f32 0.0, %v281
      %v283 = vpop.f32.mrf.mxu0
      %284 = vdwg.mxu0
      %vm285 = vcmask 523264
      %286 = vst.msk [vmem:[%s194] sm:$0xff] %vm285, %v277
      %vm287 = vcmask 519168
      %288 = vst.msk [vmem:[%s194 + $0x8] sm:$0xf] %vm287, %v282
      %p289 = scmp.lt.s32.totalorder %s17, 1
      %s290 = scalar_select %p289, %s17, 1
      %p291 = scmp.lt.s32.totalorder %s18, 0
      %s292 = scalar_select %p291, %s18, 0
      %s293 = smul.addr %s290, 2
      %s294 = sadd.s32 %s292, %s293
      %s295 = smul.addr %s294, 8
      %s296 = scalar_lea.vmem %s2, %s295
      // Predicated region
      $region29: #{tpu_custom_call.1} parent=27 // pred_check
        %p297 = pneg %p99
      $region30: #{tpu_custom_call.1} parent=27 // pred_check_branch
        %299 = sbr.rel (%p297) target = $region32
      $region31: #{tpu_custom_call.1} parent=27 // pred_region
        _
      $region32: #{tpu_custom_call.1} parent=27 // pred_fallthru
        _
    $region28: #{tpu_custom_call.1} parent=5 // pred_fallthru
      _
    %p300 = scmp.le.s32.totalorder 2, %s8
    // Predicated region
    $region33: #{tpu_custom_call.1} parent=5 // pred_check
      %p301 = pneg %p300
    $region34: #{tpu_custom_call.1} parent=5 // pred_check_branch
      %303 = sbr.rel (%p301) target = $region36
    $region35: #{tpu_custom_call.1} parent=5 // pred_region
      %s304 = ssub.s32 %s8, 2
      // Predicated region
      $region37: #{tpu_custom_call.1} parent=35 // pred_check
        %p305 = pneg %p105
      $region38: #{tpu_custom_call.1} parent=35 // pred_check_branch
        %307 = sbr.rel (%p305) target = $region40
      $region39: #{tpu_custom_call.1} parent=35 // pred_region
        %p308 = scmp.lt.s32.totalorder %s19, 1
        %s309 = scalar_select %p308, %s19, 1
        %p310 = scmp.lt.s32.totalorder %s20, 0
        %s311 = scalar_select %p310, %s20, 0
        %s312 = smul.addr %s309, 2
        %s313 = sadd.s32 %s311, %s312
        %s314 = smul.addr %s313, 8
        %s315 = scalar_lea.vmem %s2, %s314
      $region40: #{tpu_custom_call.1} parent=35 // pred_fallthru
        _
    $region36: #{tpu_custom_call.1} parent=5 // pred_fallthru
      _
  $region6: #{tpu_custom_call.1} parent=0 // loop_footer
    %s12 = sadd.s32 1, %s8
  $region7: #{tpu_custom_call.1} parent=0 // loop_footer_branch
    %7 = sbr.rel target = $region3
  $region8: #{tpu_custom_call.1} parent=0 // loop_exit
    _

</llo_original>
